<compile_context>
chip_gen: v6e
topology: v6e:2x2x1
jax: 0.10.0
libtpu: 0.0.40
codegen_flags: <defaults>
</compile_context>

<pallas_src>
import math
import jax
import jax.numpy as jnp
from jax.experimental import pallas as pl
from jax.experimental.pallas import tpu as pltpu

_LN_EPS = 1e-5  # torch.nn.LayerNorm default


def _layernorm(x, gamma, beta):
    # One-pass LN: independent sum(x) and sum(x*x), var = E[x^2] - mu^2 (biased, as in torch).
    mu = jnp.mean(x, axis=-1, keepdims=True)
    ms = jnp.mean(x * x, axis=-1, keepdims=True)
    var = ms - mu * mu
    return (x - mu) * jax.lax.rsqrt(var + _LN_EPS) * gamma + beta


def critic_kernel(state_ref, action_ref, w1_ref, w2s_ref, w2a_ref, misc_ref, out_ref):
    b1, g1, be1 = misc_ref[0:1, :], misc_ref[1:2, :], misc_ref[2:3, :]
    b2, g2, be2 = misc_ref[3:4, :], misc_ref[4:5, :], misc_ref[5:6, :]
    w3_row = misc_ref[6:7, :]
    b3 = misc_ref[7:8, 0:1]

    # fcs1: Linear(S->H) + LayerNorm + ReLU   (bf16 MXU operands, f32 accumulate & elementwise)
    xs = jnp.dot(state_ref[...], w1_ref[...], preferred_element_type=jnp.float32) + b1
    xs = jnp.maximum(_layernorm(xs, g1, be1), 0.0)

    # fc2: Linear(concat(xs, action) -> H) + LayerNorm + ReLU  (exact concat split)
    x = (jnp.dot(xs.astype(w2s_ref.dtype), w2s_ref[...], preferred_element_type=jnp.float32)
         + jnp.dot(action_ref[...], w2a_ref[...], preferred_element_type=jnp.float32)
         + b2)
    x = jnp.maximum(_layernorm(x, g2, be2), 0.0)

    # fc3: Linear(H->1) as VPU multiply + XLU lane reduction (avoids an N=1 MXU matmul).
    out_ref[...] = jnp.sum(x * w3_row, axis=-1, keepdims=True) + b3


def _round_up(x, m):
    return (x + m - 1) // m * m


def critic_forward(state, action, params, *, tile_b=None):
    B, S = state.shape
    A = action.shape[1]
    H = params["w1"].shape[1]
    w_dtype = params["w1"].dtype
    w_bytes = jnp.dtype(w_dtype).itemsize

    # Batch tile: multiple of 8 sublanes, capped so double-buffered tiles stay far under
    # the 64 MiB v7x VMEM budget.
    if tile_b is None:
        tile_b = min(512, _round_up(B, 8))
    tile_b = max(8, (tile_b // 8) * 8)
    B_pad = _round_up(B, tile_b)
    if B_pad != B:
        state = jnp.pad(state, ((0, B_pad - B), (0, 0)))
        action = jnp.pad(action, ((0, B_pad - B), (0, 0)))

    # Cast streamed activations to the weight storage dtype in the wrapper (bf16 MXU path);
    # everything elementwise inside the kernel stays f32.
    state = state.astype(w_dtype)
    action = action.astype(w_dtype)

    grid = (B_pad // tile_b,)
    const = lambda i: (0, 0)   # weights / packed params: VMEM-resident across the grid
    batch = lambda i: (i, 0)   # batch tiles stream with double-buffered DMA

    in_specs = [
        pl.BlockSpec((tile_b, S), batch),
        pl.BlockSpec((tile_b, A), batch),
        pl.BlockSpec((S, H), const),
        pl.BlockSpec((H, H), const),
        pl.BlockSpec((A, H), const),
        pl.BlockSpec((8, H), const),
    ]
    out_specs = pl.BlockSpec((tile_b, 1), batch)
    # TODO(synk): (TILE_B, 1) output stores are lane-masked; acceptable here since fc3 is the
    # final op with no dependent work, a lane-dense (transposed) layout would need B on lanes.

    weight_bytes = (S * H + H * H + A * H) * w_bytes + 8 * H * 4
    tile_bytes = tile_b * (S + A) * w_bytes + tile_b * 4
    vmem_limit = int(min(64 << 20, max(16 << 20, 2 * weight_bytes + 4 * tile_bytes + (4 << 20))))

    cost = pl.CostEstimate(
        flops=2 * B_pad * H * (S + H + A + 1),
        transcendentals=2 * B_pad,  # one rsqrt per row per LayerNorm
        bytes_accessed=weight_bytes + B_pad * (S + A) * w_bytes + B_pad * 4,
    )

    out = pl.pallas_call(
        critic_kernel,
        grid=grid,
        in_specs=in_specs,
        out_specs=out_specs,
        out_shape=jax.ShapeDtypeStruct((B_pad, 1), jnp.float32),
        compiler_params=pltpu.CompilerParams(
            dimension_semantics=("parallel",),   # megacore batch sharding on v7x
            vmem_limit_bytes=vmem_limit,
        ),
        cost_estimate=cost,
    )(state, action, params["w1"], params["w2s"], params["w2a"], params["misc"])

    return out[:B]


# ----------------------------- parameters & reference -----------------------------

def _orthogonal(key, shape, gain):
    """Deterministic orthogonal init (like torch.nn.init.orthogonal_)."""
    rows, cols = shape
    n = max(rows, cols)
    a = jax.random.normal(key, (n, n), dtype=jnp.float32)
    q, r = jnp.linalg.qr(a)
    q = q * jnp.sign(jnp.diag(r))
    return gain * q[:rows, :cols]


def init_params(key, state_size, action_size, hidden_size, *, weight_dtype=jnp.bfloat16):
    k1, k2, k3 = jax.random.split(key, 3)
    gain = math.sqrt(2.0)
    # PyTorch Linear weight is (out, in); we store transposed (in, out).
    w1_t = _orthogonal(k1, (hidden_size, state_size), gain)                   # (H, S)
    w2_t = _orthogonal(k2, (hidden_size, hidden_size + action_size), gain)    # (H, H+A)
    w3 = jax.random.uniform(k3, (1, hidden_size), minval=-0.003, maxval=0.003,
                            dtype=jnp.float32)                                # (1, H)

    H = hidden_size
    misc = jnp.zeros((8, H), jnp.float32)
    misc = misc.at[1, :].set(1.0)       # LayerNorm1 gamma
    misc = misc.at[4, :].set(1.0)       # LayerNorm2 gamma
    misc = misc.at[6, :].set(w3[0])     # fc3 weight row
    # rows 0,2,3,5 = biases/betas (zero), row 7 = fc3 bias (zero, broadcast)

    return {
        "w1": w1_t.T.astype(weight_dtype),                     # (S, H)
        "w2s": w2_t[:, :hidden_size].T.astype(weight_dtype),   # (H, H)
        "w2a": w2_t[:, hidden_size:].T.astype(weight_dtype),   # (A, H)
        "misc": misc,                                          # (8, H) f32 packed
    }


def critic_reference(state, action, p):
    """Pure-JAX reference with the same quantization points as the kernel."""
    f32 = jnp.float32
    wdt = p["w1"].dtype
    hp = jax.lax.Precision.HIGHEST
    s = state.astype(wdt).astype(f32)
    a = action.astype(wdt).astype(f32)
    w1, w2s, w2a = (p[k].astype(f32) for k in ("w1", "w2s", "w2a"))
    m = p["misc"]
    b1, g1, be1, b2, g2, be2 = m[0:1], m[1:2], m[2:3], m[3:4], m[4:5], m[5:6]
    w3_row, b3 = m[6:7], m[7:8, 0:1]

    xs = jnp.dot(s, w1, precision=hp) + b1
    xs = jnp.maximum(_layernorm(xs, g1, be1), 0.0)
    x = (jnp.dot(xs.astype(wdt).astype(f32), w2s, precision=hp)
         + jnp.dot(a, w2a, precision=hp) + b2)
    x = jnp.maximum(_layernorm(x, g2, be2), 0.0)
    return jnp.sum(x * w3_row, axis=-1, keepdims=True) + b3


if __name__ == "__main__":
    # Small shapes; H kept lane-aligned (multiple of 128), B not a multiple of the tile
    # so the padding + multi-step grid path is exercised.
    B, STATE, ACTION, HIDDEN = 20, 16, 4, 128

    key = jax.random.PRNGKey(0)
    k_state, k_action, k_params = jax.random.split(key, 3)
    state = jax.random.normal(k_state, (B, STATE), dtype=jnp.float32)
    action = jax.random.normal(k_action, (B, ACTION), dtype=jnp.float32)
    params = init_params(k_params, STATE, ACTION, HIDDEN)

    q = critic_forward(state, action, params, tile_b=8)   # grid of 3 batch tiles
    q = jax.block_until_ready(q)

    q_ref = critic_reference(state, action, params)
    assert q.shape == (B, 1), q.shape
    assert jnp.allclose(q, q_ref, atol=2e-4, rtol=2e-4), \
        float(jnp.max(jnp.abs(q - q_ref)))

    print("KERNEL_OK")
</pallas_src>

<mosaic_0001>
module attributes {stable_mosaic.version = 11 : i64} {
  func.func @critic_kernel(%arg0: i32, %arg1: memref<8x16xbf16, #tpu.memory_space<vmem>>, %arg2: memref<8x4xbf16, #tpu.memory_space<vmem>>, %arg3: memref<16x128xbf16, #tpu.memory_space<vmem>>, %arg4: memref<128x128xbf16, #tpu.memory_space<vmem>>, %arg5: memref<4x128xbf16, #tpu.memory_space<vmem>>, %arg6: memref<8x128xf32, #tpu.memory_space<vmem>>, %arg7: memref<8x1xf32, #tpu.memory_space<vmem>>) attributes {dimension_semantics = [#tpu.dimension_semantics<parallel>], iteration_bounds = array<i64: 3>, scalar_prefetch = 0 : i64, scratch_operands = 0 : i64, tpu.core_type = #tpu.core_type<tc>, window_params = [{transform_indices = @transform_0, window_bounds = array<i64: 8, 16>}, {transform_indices = @transform_1, window_bounds = array<i64: 8, 4>}, {pipeline_mode = #tpu.pipeline_mode<synchronous>, transform_indices = @transform_2, window_bounds = array<i64: 16, 128>}, {pipeline_mode = #tpu.pipeline_mode<synchronous>, transform_indices = @transform_3, window_bounds = array<i64: 128, 128>}, {pipeline_mode = #tpu.pipeline_mode<synchronous>, transform_indices = @transform_4, window_bounds = array<i64: 4, 128>}, {pipeline_mode = #tpu.pipeline_mode<synchronous>, transform_indices = @transform_5, window_bounds = array<i64: 8, 128>}, {transform_indices = @transform_6, window_bounds = array<i64: 8, 1>}]} {
    %c0 = arith.constant 0 : index
    %c0_0 = arith.constant 0 : index
    %0 = vector.load %arg6[%c0, %c0_0] : memref<8x128xf32, #tpu.memory_space<vmem>>, vector<1x128xf32>
    %c1 = arith.constant 1 : index
    %c0_1 = arith.constant 0 : index
    %1 = vector.load %arg6[%c1, %c0_1] : memref<8x128xf32, #tpu.memory_space<vmem>>, vector<1x128xf32>
    %c2 = arith.constant 2 : index
    %c0_2 = arith.constant 0 : index
    %2 = vector.load %arg6[%c2, %c0_2] : memref<8x128xf32, #tpu.memory_space<vmem>>, vector<1x128xf32>
    %c3 = arith.constant 3 : index
    %c0_3 = arith.constant 0 : index
    %3 = vector.load %arg6[%c3, %c0_3] : memref<8x128xf32, #tpu.memory_space<vmem>>, vector<1x128xf32>
    %c4 = arith.constant 4 : index
    %c0_4 = arith.constant 0 : index
    %4 = vector.load %arg6[%c4, %c0_4] : memref<8x128xf32, #tpu.memory_space<vmem>>, vector<1x128xf32>
    %c5 = arith.constant 5 : index
    %c0_5 = arith.constant 0 : index
    %5 = vector.load %arg6[%c5, %c0_5] : memref<8x128xf32, #tpu.memory_space<vmem>>, vector<1x128xf32>
    %c6 = arith.constant 6 : index
    %c0_6 = arith.constant 0 : index
    %6 = vector.load %arg6[%c6, %c0_6] : memref<8x128xf32, #tpu.memory_space<vmem>>, vector<1x128xf32>
    %c7 = arith.constant 7 : index
    %c0_7 = arith.constant 0 : index
    %7 = vector.load %arg6[%c7, %c0_7] : memref<8x128xf32, #tpu.memory_space<vmem>>, vector<1x1xf32>
    %c0_8 = arith.constant 0 : index
    %c0_9 = arith.constant 0 : index
    %8 = vector.load %arg1[%c0_8, %c0_9] : memref<8x16xbf16, #tpu.memory_space<vmem>>, vector<8x16xbf16>
    %c0_10 = arith.constant 0 : index
    %c0_11 = arith.constant 0 : index
    %9 = vector.load %arg3[%c0_10, %c0_11] : memref<16x128xbf16, #tpu.memory_space<vmem>>, vector<16x128xbf16>
    %cst = arith.constant dense<0.000000e+00> : vector<8x128xf32>
    %10 = tpu.matmul %8, %9, %cst {dimension_numbers = #tpu.dot_dimension_numbers<[1], [0], [0], [1], [0, 0, 1, 1], [], []>} : vector<8x16xbf16>, vector<16x128xbf16>, vector<8x128xf32> -> vector<8x128xf32>
    %11 = vector.broadcast %0 : vector<1x128xf32> to vector<8x128xf32>
    %12 = arith.addf %10, %11 : vector<8x128xf32>
    %cst_12 = arith.constant dense<0.000000e+00> : vector<8xf32>
    %13 = vector.multi_reduction <add>, %12, %cst_12 [1] : vector<8x128xf32> to vector<8xf32>
    %14 = vector.shape_cast %13 : vector<8xf32> to vector<8x1xf32>
    %cst_13 = arith.constant 1.280000e+02 : f32
    %15 = vector.broadcast %cst_13 : f32 to vector<8x1xf32>
    %16 = arith.divf %14, %15 : vector<8x1xf32>
    %17 = arith.mulf %12, %12 : vector<8x128xf32>
    %cst_14 = arith.constant dense<0.000000e+00> : vector<8xf32>
    %18 = vector.multi_reduction <add>, %17, %cst_14 [1] : vector<8x128xf32> to vector<8xf32>
    %19 = vector.shape_cast %18 : vector<8xf32> to vector<8x1xf32>
    %cst_15 = arith.constant 1.280000e+02 : f32
    %20 = vector.broadcast %cst_15 : f32 to vector<8x1xf32>
    %21 = arith.divf %19, %20 : vector<8x1xf32>
    %22 = arith.mulf %16, %16 : vector<8x1xf32>
    %23 = arith.subf %21, %22 : vector<8x1xf32>
    %24 = vector.broadcast %16 : vector<8x1xf32> to vector<8x128xf32>
    %25 = arith.subf %12, %24 : vector<8x128xf32>
    %cst_16 = arith.constant 9.99999974E-6 : f32
    %26 = vector.broadcast %cst_16 : f32 to vector<8x1xf32>
    %27 = arith.addf %23, %26 : vector<8x1xf32>
    %28 = math.rsqrt %27 : vector<8x1xf32>
    %29 = vector.broadcast %28 : vector<8x1xf32> to vector<8x128xf32>
    %30 = arith.mulf %25, %29 : vector<8x128xf32>
    %31 = vector.broadcast %1 : vector<1x128xf32> to vector<8x128xf32>
    %32 = arith.mulf %30, %31 : vector<8x128xf32>
    %33 = vector.broadcast %2 : vector<1x128xf32> to vector<8x128xf32>
    %34 = arith.addf %32, %33 : vector<8x128xf32>
    %cst_17 = arith.constant 0.000000e+00 : f32
    %35 = vector.broadcast %cst_17 : f32 to vector<8x128xf32>
    %36 = arith.maximumf %34, %35 : vector<8x128xf32>
    %37 = arith.truncf %36 : vector<8x128xf32> to vector<8x128xbf16>
    %c0_18 = arith.constant 0 : index
    %c0_19 = arith.constant 0 : index
    %38 = vector.load %arg4[%c0_18, %c0_19] : memref<128x128xbf16, #tpu.memory_space<vmem>>, vector<128x128xbf16>
    %cst_20 = arith.constant dense<0.000000e+00> : vector<8x128xf32>
    %39 = tpu.matmul %37, %38, %cst_20 {dimension_numbers = #tpu.dot_dimension_numbers<[1], [0], [0], [1], [0, 0, 1, 1], [], []>} : vector<8x128xbf16>, vector<128x128xbf16>, vector<8x128xf32> -> vector<8x128xf32>
    %c0_21 = arith.constant 0 : index
    %c0_22 = arith.constant 0 : index
    %40 = vector.load %arg2[%c0_21, %c0_22] : memref<8x4xbf16, #tpu.memory_space<vmem>>, vector<8x4xbf16>
    %c0_23 = arith.constant 0 : index
    %c0_24 = arith.constant 0 : index
    %41 = vector.load %arg5[%c0_23, %c0_24] : memref<4x128xbf16, #tpu.memory_space<vmem>>, vector<4x128xbf16>
    %cst_25 = arith.constant dense<0.000000e+00> : vector<8x128xf32>
    %42 = tpu.matmul %40, %41, %cst_25 {dimension_numbers = #tpu.dot_dimension_numbers<[1], [0], [0], [1], [0, 0, 1, 1], [], []>} : vector<8x4xbf16>, vector<4x128xbf16>, vector<8x128xf32> -> vector<8x128xf32>
    %43 = arith.addf %39, %42 : vector<8x128xf32>
    %44 = vector.broadcast %3 : vector<1x128xf32> to vector<8x128xf32>
    %45 = arith.addf %43, %44 : vector<8x128xf32>
    %cst_26 = arith.constant dense<0.000000e+00> : vector<8xf32>
    %46 = vector.multi_reduction <add>, %45, %cst_26 [1] : vector<8x128xf32> to vector<8xf32>
    %47 = vector.shape_cast %46 : vector<8xf32> to vector<8x1xf32>
    %cst_27 = arith.constant 1.280000e+02 : f32
    %48 = vector.broadcast %cst_27 : f32 to vector<8x1xf32>
    %49 = arith.divf %47, %48 : vector<8x1xf32>
    %50 = arith.mulf %45, %45 : vector<8x128xf32>
    %cst_28 = arith.constant dense<0.000000e+00> : vector<8xf32>
    %51 = vector.multi_reduction <add>, %50, %cst_28 [1] : vector<8x128xf32> to vector<8xf32>
    %52 = vector.shape_cast %51 : vector<8xf32> to vector<8x1xf32>
    %cst_29 = arith.constant 1.280000e+02 : f32
    %53 = vector.broadcast %cst_29 : f32 to vector<8x1xf32>
    %54 = arith.divf %52, %53 : vector<8x1xf32>
    %55 = arith.mulf %49, %49 : vector<8x1xf32>
    %56 = arith.subf %54, %55 : vector<8x1xf32>
    %57 = vector.broadcast %49 : vector<8x1xf32> to vector<8x128xf32>
    %58 = arith.subf %45, %57 : vector<8x128xf32>
    %cst_30 = arith.constant 9.99999974E-6 : f32
    %59 = vector.broadcast %cst_30 : f32 to vector<8x1xf32>
    %60 = arith.addf %56, %59 : vector<8x1xf32>
    %61 = math.rsqrt %60 : vector<8x1xf32>
    %62 = vector.broadcast %61 : vector<8x1xf32> to vector<8x128xf32>
    %63 = arith.mulf %58, %62 : vector<8x128xf32>
    %64 = vector.broadcast %4 : vector<1x128xf32> to vector<8x128xf32>
    %65 = arith.mulf %63, %64 : vector<8x128xf32>
    %66 = vector.broadcast %5 : vector<1x128xf32> to vector<8x128xf32>
    %67 = arith.addf %65, %66 : vector<8x128xf32>
    %cst_31 = arith.constant 0.000000e+00 : f32
    %68 = vector.broadcast %cst_31 : f32 to vector<8x128xf32>
    %69 = arith.maximumf %67, %68 : vector<8x128xf32>
    %70 = vector.broadcast %6 : vector<1x128xf32> to vector<8x128xf32>
    %71 = arith.mulf %69, %70 : vector<8x128xf32>
    %cst_32 = arith.constant dense<0.000000e+00> : vector<8xf32>
    %72 = vector.multi_reduction <add>, %71, %cst_32 [1] : vector<8x128xf32> to vector<8xf32>
    %73 = vector.shape_cast %72 : vector<8xf32> to vector<8x1xf32>
    %74 = vector.broadcast %7 : vector<1x1xf32> to vector<8x1xf32>
    %75 = arith.addf %73, %74 : vector<8x1xf32>
    %c0_33 = arith.constant 0 : index
    %c0_34 = arith.constant 0 : index
    %76 = vector.load %arg7[%c0_33, %c0_34] : memref<8x1xf32, #tpu.memory_space<vmem>>, vector<8x1xf32>
    tpu.vector_store %arg7[%c0_33, %c0_34], %75 {strides = array<i32>} : memref<8x1xf32, #tpu.memory_space<vmem>>, vector<8x1xf32>,
    return
  }
  func.func @transform_0(%arg0: i32) -> (i32, i32) {
    %c0_i32 = arith.constant 0 : i32
    %c0_i32_0 = arith.constant 0 : i32
    return %arg0, %c0_i32 : i32, i32
  }
  func.func @transform_1(%arg0: i32) -> (i32, i32) {
    %c0_i32 = arith.constant 0 : i32
    %c0_i32_0 = arith.constant 0 : i32
    return %arg0, %c0_i32 : i32, i32
  }
  func.func @transform_2(%arg0: i32) -> (i32, i32) {
    %c0_i32 = arith.constant 0 : i32
    %c0_i32_0 = arith.constant 0 : i32
    %c0_i32_1 = arith.constant 0 : i32
    return %c0_i32, %c0_i32_0 : i32, i32
  }
  func.func @transform_3(%arg0: i32) -> (i32, i32) {
    %c0_i32 = arith.constant 0 : i32
    %c0_i32_0 = arith.constant 0 : i32
    %c0_i32_1 = arith.constant 0 : i32
    return %c0_i32, %c0_i32_0 : i32, i32
  }
  func.func @transform_4(%arg0: i32) -> (i32, i32) {
    %c0_i32 = arith.constant 0 : i32
    %c0_i32_0 = arith.constant 0 : i32
    %c0_i32_1 = arith.constant 0 : i32
    return %c0_i32, %c0_i32_0 : i32, i32
  }
  func.func @transform_5(%arg0: i32) -> (i32, i32) {
    %c0_i32 = arith.constant 0 : i32
    %c0_i32_0 = arith.constant 0 : i32
    %c0_i32_1 = arith.constant 0 : i32
    return %c0_i32, %c0_i32_0 : i32, i32
  }
  func.func @transform_6(%arg0: i32) -> (i32, i32) {
    %c0_i32 = arith.constant 0 : i32
    %c0_i32_0 = arith.constant 0 : i32
    return %arg0, %c0_i32 : i32, i32
  }
}

</mosaic_0001>

<llo_original>
// kernel: tpu_custom_call.1
$region0: #{tpu_custom_call.1}
  #allocation0 [shape = 'u32[]', space=smem, size = 0x4, offset = 0x4, fixed_abs, tag = 'smem constant byte address 0x4 - core index']
  #allocation1 [shape = 'u32[144,128]{1,0:T(1,128)}', space=vmem, size = 0x12000, scoped, tag = 'internal scratch']
  %s0 = inlined_call_operand.vmem [shape: bf16[24,16], index: 0, kind: input, shape index: {}]
  %s1 = inlined_call_operand.vmem [shape: bf16[24,4], index: 1, kind: input, shape index: {}]
  %s2 = inlined_call_operand.vmem [shape: bf16[16,128], index: 2, kind: input, shape index: {}]
  %s3 = inlined_call_operand.hbm [shape: bf16[128,128], index: 3, kind: input, shape index: {}]
  %s4 = inlined_call_operand.vmem [shape: bf16[4,128], index: 4, kind: input, shape index: {}]
  %s5 = inlined_call_operand.vmem [shape: f32[8,128], index: 5, kind: input, shape index: {}]
  %s6 = inlined_call_operand.vmem [shape: f32[24,1], index: 6, kind: output, shape index: {}]
  %s7 = sld [smem:[#allocation0]]
  $region61: #{tpu_custom_call.1} parent=0
    _
  %s9 = ssub.s32 1, %s7
  %s10 = scalar_select 0, %s9, %s7
  $region1: #{tpu_custom_call.1} parent=0
    #allocation2 [shape = 'u8[32768]{0}', space=vmem, size = 0x8000, scoped, tag = 'input window, operand 3, single buffered']
    #allocation3 [shape = 's32[2]{0}', space=sflag, size = 0x8, scoped, tag = 'scoped memory for tpu_custom_call.1']
    %11 = vsyncpa [#allocation3], 0
    loop: start=0, step=1, limit=5
    $region2: #{tpu_custom_call.1} parent=1 // loop_pre_header
      _
    $region3: #{tpu_custom_call.1} parent=1 // loop_header
      %s13 = sphi 0, %s17
      %p14 = scmp.ge.s32.totalorder %s13, 5
      %s23 = sphi 0, %s25
      %s26 = sphi 0, %s23
      %s27 = sphi 0, %s26
      %s43 = sphi 0, %s27
      %s49 = sphi 0, %s51
      %s52 = sphi 0, %s49
      %s53 = sphi 0, %s52
      %s69 = sphi 0, %s53
      %s73 = sphi 0, %s73
      %s75 = sphi 0, %s73
      %s76 = sphi 0, %s75
      %s90 = sphi 0, %s76
      %s94 = sphi 0, %s94
      %s96 = sphi 0, %s94
      %s97 = sphi 0, %s96
      %s111 = sphi 0, %s97
      %s115 = sphi 0, %s115
      %s117 = sphi 0, %s115
      %s118 = sphi 0, %s117
      %s132 = sphi 0, %s118
      %s136 = sphi 0, %s136
      %s138 = sphi 0, %s136
      %s139 = sphi 0, %s138
      %s153 = sphi 0, %s139
      %s159 = sphi 0, %s161
      %s162 = sphi 0, %s159
      %s163 = sphi 0, %s162
      %s179 = sphi 0, %s163
    $region4: #{tpu_custom_call.1} parent=1 // loop_header_branch
      %16 = sbr.rel (%p14) target = $region8
    $region5: #{tpu_custom_call.1} parent=1 // loop_body
      %s18 = ssub.s32 %s13, 1
      %s19 = ssub.s32 %s13, 2
      %s20 = sadd.s32 %s13, 1
      %s21 = ssub.s32 %s13, %s20
      %p22 = scmp.eq.s32.totalorder %s21, 0
      %s24 = sadd.s32 %s23, 1
      %s25 = scalar_select %p22, %s23, %s24
      %p28 = pneg %p22
      %p29 = scmp.eq.s32.totalorder %s13, 2
      %p30 = por %p28, %p29
      %p31 = scmp.ne.s32.totalorder %s23, %s26
      %p32 = scmp.eq.s32.totalorder %s13, 0
      %p33 = por %p31, %p32
      %p34 = scmp.ne.s32.totalorder %s23, %s26
      %p35 = scmp.eq.s32.totalorder %s18, 2
      %p36 = por %p34, %p35
      %p37 = scmp.ne.s32.totalorder %s26, %s27
      %p38 = scmp.eq.s32.totalorder %s18, 0
      %p39 = por %p37, %p38
      %p40 = scmp.ne.s32.totalorder %s26, %s27
      %p41 = scmp.eq.s32.totalorder %s19, 2
      %p42 = por %p40, %p41
      %p44 = scmp.ne.s32.totalorder %s27, %s43
      %p45 = scmp.eq.s32.totalorder %s19, 0
      %p46 = por %p44, %p45
      %s47 = ssub.s32 %s13, %s20
      %p48 = scmp.eq.s32.totalorder %s47, 0
      %s50 = sadd.s32 %s49, 1
      %s51 = scalar_select %p48, %s49, %s50
      %p54 = pneg %p48
      %p55 = scmp.eq.s32.totalorder %s13, 2
      %p56 = por %p54, %p55
      %p57 = scmp.ne.s32.totalorder %s49, %s52
      %p58 = scmp.eq.s32.totalorder %s13, 0
      %p59 = por %p57, %p58
      %p60 = scmp.ne.s32.totalorder %s49, %s52
      %p61 = scmp.eq.s32.totalorder %s18, 2
      %p62 = por %p60, %p61
      %p63 = scmp.ne.s32.totalorder %s52, %s53
      %p64 = scmp.eq.s32.totalorder %s18, 0
      %p65 = por %p63, %p64
      %p66 = scmp.ne.s32.totalorder %s52, %s53
      %p67 = scmp.eq.s32.totalorder %s19, 2
      %p68 = por %p66, %p67
      %p70 = scmp.ne.s32.totalorder %s53, %s69
      %p71 = scmp.eq.s32.totalorder %s19, 0
      %p72 = por %p70, %p71
      %s74 = sadd.s32 %s73, 1
      %p77 = scmp.eq.s32.totalorder %s13, 2
      %p78 = scmp.ne.s32.totalorder %s73, %s75
      %p79 = scmp.eq.s32.totalorder %s13, 0
      %p80 = por %p78, %p79
      %p81 = scmp.ne.s32.totalorder %s73, %s75
      %p82 = scmp.eq.s32.totalorder %s18, 2
      %p83 = por %p81, %p82
      %p84 = scmp.ne.s32.totalorder %s75, %s76
      %p85 = scmp.eq.s32.totalorder %s18, 0
      %p86 = por %p84, %p85
      %p87 = scmp.ne.s32.totalorder %s75, %s76
      %p88 = scmp.eq.s32.totalorder %s19, 2
      %p89 = por %p87, %p88
      %p91 = scmp.ne.s32.totalorder %s76, %s90
      %p92 = scmp.eq.s32.totalorder %s19, 0
      %p93 = por %p91, %p92
      %s95 = sadd.s32 %s94, 1
      %p98 = scmp.eq.s32.totalorder %s13, 2
      %p99 = scmp.ne.s32.totalorder %s94, %s96
      %p100 = scmp.eq.s32.totalorder %s13, 0
      %p101 = por %p99, %p100
      %p102 = scmp.ne.s32.totalorder %s94, %s96
      %p103 = scmp.eq.s32.totalorder %s18, 2
      %p104 = por %p102, %p103
      %p105 = scmp.ne.s32.totalorder %s96, %s97
      %p106 = scmp.eq.s32.totalorder %s18, 0
      %p107 = por %p105, %p106
      %p108 = scmp.ne.s32.totalorder %s96, %s97
      %p109 = scmp.eq.s32.totalorder %s19, 2
      %p110 = por %p108, %p109
      %p112 = scmp.ne.s32.totalorder %s97, %s111
      %p113 = scmp.eq.s32.totalorder %s19, 0
      %p114 = por %p112, %p113
      %s116 = sadd.s32 %s115, 1
      %p119 = scmp.eq.s32.totalorder %s13, 2
      %p120 = scmp.ne.s32.totalorder %s115, %s117
      %p121 = scmp.eq.s32.totalorder %s13, 0
      %p122 = por %p120, %p121
      %p123 = scmp.ne.s32.totalorder %s115, %s117
      %p124 = scmp.eq.s32.totalorder %s18, 2
      %p125 = por %p123, %p124
      %p126 = scmp.ne.s32.totalorder %s117, %s118
      %p127 = scmp.eq.s32.totalorder %s18, 0
      %p128 = por %p126, %p127
      %p129 = scmp.ne.s32.totalorder %s117, %s118
      %p130 = scmp.eq.s32.totalorder %s19, 2
      %p131 = por %p129, %p130
      %p133 = scmp.ne.s32.totalorder %s118, %s132
      %p134 = scmp.eq.s32.totalorder %s19, 0
      %p135 = por %p133, %p134
      %s137 = sadd.s32 %s136, 1
      %p140 = scmp.eq.s32.totalorder %s13, 2
      %p141 = scmp.ne.s32.totalorder %s136, %s138
      %p142 = scmp.eq.s32.totalorder %s13, 0
      %p143 = por %p141, %p142
      %p144 = scmp.ne.s32.totalorder %s136, %s138
      %p145 = scmp.eq.s32.totalorder %s18, 2
      %p146 = por %p144, %p145
      %p147 = scmp.ne.s32.totalorder %s138, %s139
      %p148 = scmp.eq.s32.totalorder %s18, 0
      %p149 = por %p147, %p148
      %p150 = scmp.ne.s32.totalorder %s138, %s139
      %p151 = scmp.eq.s32.totalorder %s19, 2
      %p152 = por %p150, %p151
      %p154 = scmp.ne.s32.totalorder %s139, %s153
      %p155 = scmp.eq.s32.totalorder %s19, 0
      %p156 = por %p154, %p155
      %s157 = ssub.s32 %s13, %s20
      %p158 = scmp.eq.s32.totalorder %s157, 0
      %s160 = sadd.s32 %s159, 1
      %s161 = scalar_select %p158, %s159, %s160
      %p164 = pneg %p158
      %p165 = scmp.eq.s32.totalorder %s13, 2
      %p166 = por %p164, %p165
      %p167 = scmp.ne.s32.totalorder %s159, %s162
      %p168 = scmp.eq.s32.totalorder %s13, 0
      %p169 = por %p167, %p168
      %p170 = scmp.ne.s32.totalorder %s159, %s162
      %p171 = scmp.eq.s32.totalorder %s18, 2
      %p172 = por %p170, %p171
      %p173 = scmp.ne.s32.totalorder %s162, %s163
      %p174 = scmp.eq.s32.totalorder %s18, 0
      %p175 = por %p173, %p174
      %p176 = scmp.ne.s32.totalorder %s162, %s163
      %p177 = scmp.eq.s32.totalorder %s19, 2
      %p178 = por %p176, %p177
      %p180 = scmp.ne.s32.totalorder %s163, %s179
      %p181 = scmp.eq.s32.totalorder %s19, 0
      %p182 = por %p180, %p181
      %p183 = scmp.le.s32.totalorder 1, %s13
      %p184 = scmp.lt.s32.totalorder %s13, 4
      %p185 = pnand %p183, %p184
      %p186 = pneg %p185
      // Predicated region
      $region9: #{tpu_custom_call.1} parent=5 // pred_check
        _
      $region10: #{tpu_custom_call.1} parent=5 // pred_check_branch
        %188 = sbr.rel (%p185) target = $region12
      $region11: #{tpu_custom_call.1} parent=5 // pred_region
        %s189 = ssub.s32 %s13, 1
        // Predicated region
        $region13: #{tpu_custom_call.1} parent=11 // pred_check
          %p190 = pneg %p86
        $region14: #{tpu_custom_call.1} parent=11 // pred_check_branch
          %192 = sbr.rel (%p190) target = $region16
        $region15: #{tpu_custom_call.1} parent=11 // pred_region
          _
        $region16: #{tpu_custom_call.1} parent=11 // pred_fallthru
          _
        // Predicated region
        $region17: #{tpu_custom_call.1} parent=11 // pred_check
          %p193 = pneg %p107
        $region18: #{tpu_custom_call.1} parent=11 // pred_check_branch
          %195 = sbr.rel (%p193) target = $region20
        $region19: #{tpu_custom_call.1} parent=11 // pred_region
          %s197 = ssub.s32 1024, 1024
          %198 = vsyncadd [#allocation3], %s197
          %s199 = sshll.u32 [#allocation2], 4
          %s200 = int_to_ptr.vmem [resolvable:$true] %s199
          %205 = dma.hbm_to_vmem [thread:$0]  %s3, 1024, %s200, [#allocation3], 64, 64, 4
        $region20: #{tpu_custom_call.1} parent=11 // pred_fallthru
          _
        // Predicated region
        $region21: #{tpu_custom_call.1} parent=11 // pred_check
          %p206 = pneg %p128
        $region22: #{tpu_custom_call.1} parent=11 // pred_check_branch
          %208 = sbr.rel (%p206) target = $region24
        $region23: #{tpu_custom_call.1} parent=11 // pred_region
          _
        $region24: #{tpu_custom_call.1} parent=11 // pred_fallthru
          _
        // Predicated region
        $region25: #{tpu_custom_call.1} parent=11 // pred_check
          %p209 = pneg %p149
        $region26: #{tpu_custom_call.1} parent=11 // pred_check_branch
          %211 = sbr.rel (%p209) target = $region28
        $region27: #{tpu_custom_call.1} parent=11 // pred_region
          _
        $region28: #{tpu_custom_call.1} parent=11 // pred_fallthru
          _
      $region12: #{tpu_custom_call.1} parent=5 // pred_fallthru
        _
      %p212 = scmp.lt.s32.totalorder %s13, 3
      // Predicated region
      $region29: #{tpu_custom_call.1} parent=5 // pred_check
        %p213 = pneg %p212
      $region30: #{tpu_custom_call.1} parent=5 // pred_check_branch
        %215 = sbr.rel (%p213) target = $region32
      $region31: #{tpu_custom_call.1} parent=5 // pred_region
        // Predicated region
        $region33: #{tpu_custom_call.1} parent=31 // pred_check
          %p216 = pneg %p33
        $region34: #{tpu_custom_call.1} parent=31 // pred_check_branch
          %218 = sbr.rel (%p216) target = $region36
        $region35: #{tpu_custom_call.1} parent=31 // pred_region
          %p219 = scmp.lt.s32.totalorder %s13, 2
          %s220 = scalar_select %p219, %s13, 2
          %s221 = smul.addr %s220, 4
          %s222 = scalar_lea.vmem %s0, %s221
        $region36: #{tpu_custom_call.1} parent=31 // pred_fallthru
          _
        // Predicated region
        $region37: #{tpu_custom_call.1} parent=31 // pred_check
          %p223 = pneg %p59
        $region38: #{tpu_custom_call.1} parent=31 // pred_check_branch
          %225 = sbr.rel (%p223) target = $region40
        $region39: #{tpu_custom_call.1} parent=31 // pred_region
          %p226 = scmp.lt.s32.totalorder %s13, 2
          %s227 = scalar_select %p226, %s13, 2
          %s228 = smul.addr %s227, 4
          %s229 = scalar_lea.vmem %s1, %s228
        $region40: #{tpu_custom_call.1} parent=31 // pred_fallthru
          _
      $region32: #{tpu_custom_call.1} parent=5 // pred_fallthru
        _
      %p230 = scmp.le.s32.totalorder 1, %s13
      %p231 = scmp.lt.s32.totalorder %s13, 4
      %p232 = pnand %p230, %p231
      %p233 = pneg %p232
      // Predicated region
      $region41: #{tpu_custom_call.1} parent=5 // pred_check
        _
      $region42: #{tpu_custom_call.1} parent=5 // pred_check_branch
        %235 = sbr.rel (%p232) target = $region44
      $region43: #{tpu_custom_call.1} parent=5 // pred_region
        %s236 = ssub.s32 %s13, 1
        // Predicated region
        $region45: #{tpu_custom_call.1} parent=43 // pred_check
          %p237 = pneg %p107
        $region46: #{tpu_custom_call.1} parent=43 // pred_check_branch
          %239 = sbr.rel (%p237) target = $region48
        $region47: #{tpu_custom_call.1} parent=43 // pred_region
          %240 = dma.done [#allocation3], 1024
        $region48: #{tpu_custom_call.1} parent=43 // pred_fallthru
          _
        %p241 = scmp.lt.s32.totalorder %s18, 2
        %s242 = scalar_select %p241, %s18, 2
        %s243 = smul.addr %s242, 4
        %s244 = scalar_lea.vmem %s0, %s243
        %p245 = pneg %p39
        %p246 = pneg %p36
        %p247 = scmp.lt.s32.totalorder %s18, 2
        %s248 = scalar_select %p247, %s18, 2
        %s249 = smul.addr %s248, 4
        %s250 = scalar_lea.vmem %s1, %s249
        %p251 = pneg %p65
        %p252 = pneg %p62
        %p253 = pneg %p86
        %p254 = pneg %p83
        %p255 = pneg %p107
        %p256 = pneg %p104
        %p257 = pneg %p128
        %p258 = pneg %p125
        %p259 = pneg %p149
        %p260 = pneg %p146
        %p261 = pneg %p175
        %p262 = pneg %p172
        %p263 = scmp.lt.s32.totalorder %s18, 2
        %s264 = scalar_select %p263, %s18, 2
        %s265 = smul.addr %s264, 8
        %s266 = scalar_lea.vmem %s6, %s265
        %p267 = scmp.lt.s32.totalorder %s18, 2
        %s268 = scalar_select %p267, %s18, 2
        %s269 = smul.addr %s268, 4
        %s270 = scalar_lea.vmem %s0, %s269
        %p271 = scmp.lt.s32.totalorder %s18, 2
        %s272 = scalar_select %p271, %s18, 2
        %s273 = smul.addr %s272, 4
        %s274 = scalar_lea.vmem %s1, %s273
        %p275 = scmp.lt.s32.totalorder %s18, 2
        %s276 = scalar_select %p275, %s18, 2
        %s277 = smul.addr %s276, 8
        %s278 = scalar_lea.vmem %s6, %s277
        %v280 = vld [vmem:[%s5] sm:$0x1]
        %v281 = vld [vmem:[%s5 + $0x1] sm:$0x1]
        %v282 = vld [vmem:[%s5 + $0x2] sm:$0x1]
        %v283 = vld [vmem:[%s5 + $0x3] sm:$0x1]
        %v284 = vld [vmem:[%s5 + $0x4] sm:$0x1]
        %v285 = vld [vmem:[%s5 + $0x5] sm:$0x1]
        %v286 = vld [vmem:[%s5 + $0x6] sm:$0x1]
        %v287 = vld [vmem:[%s5 + $0x7] sm:$0x1]
        %v288 = vld [vmem:[%s270] sm:$0xf]
        %v289 = vld [vmem:[%s2] sm:$0xf]
        %v290 = vld [vmem:[%s2 + $0x4] sm:$0xf]
        %v291 = vlaneseq
        %v292 = vshrl.u32 %v291, 7
        %v293 = vsub.s32 0, %v292
        %v294 = vrot.slane %v280, %v293
        %v297 = vunpack.c.l.b16 %v289
        %v298 = vunpack.c.l.b16 %v290
        %v299 = vpack.c.b16 %v298, %v297
        %vm301 = vcmask 130048
        %v303 = vsel %vm301, %v288, 0
        %305 = vmatprep.subr.bf16.mxu0 0
        %306 = vmatpush1.bf16.msra.mxu0 0
        %307 = vmatprep.subr.bf16.mxu0 0
        %308 = vmatpush1.bf16.msra.mxu0 0
        %309 = vmatprep.subr.bf16.mxu0 0
        %310 = vmatpush1.bf16.msra.mxu0 0
        %311 = vmatprep.subr.bf16.mxu0 0
        %312 = vmatpush1.bf16.msra.mxu0 0
        %313 = vmatprep.subr.bf16.mxu0 0
        %314 = vmatpush1.bf16.msra.mxu0 0
        %315 = vmatprep.subr.bf16.mxu0 0
        %316 = vmatpush1.bf16.msra.mxu0 0
        %317 = vmatprep.subr.bf16.mxu0 0
        %318 = vmatpush1.bf16.msra.mxu0 0
        %319 = vmatprep.subr.bf16.mxu0 0
        %320 = vmatpush1.bf16.msra.mxu0 %v299
        %321 = vmatprep.subr.bf16.mxu0 0
        %322 = vmatpush2.bf16.msra.mxu0 0
        %323 = vmatprep.subr.bf16.mxu0 0
        %324 = vmatpush2.bf16.msra.mxu0 0
        %325 = vmatprep.subr.bf16.mxu0 0
        %326 = vmatpush2.bf16.msra.mxu0 0
        %327 = vmatprep.subr.bf16.mxu0 0
        %328 = vmatpush2.bf16.msra.mxu0 0
        %329 = vmatprep.subr.bf16.mxu0 0
        %330 = vmatpush2.bf16.msra.mxu0 0
        %331 = vmatprep.subr.bf16.mxu0 0
        %332 = vmatpush2.bf16.msra.mxu0 0
        %333 = vmatprep.subr.bf16.mxu0 0
        %334 = vmatpush2.bf16.msra.mxu0 0
        %335 = vmatprep.subr.bf16.mxu0 0
        %336 = vmatpush2.bf16.msra.mxu0 0
        %337 = vmatprep.mubr.bf16.mxu0 0
        %338 = vmatmul.mubr.bf16.gmra.mxu0 %v303
        %v339 = vpop.f32.mrf.mxu0
        %v340 = vadd.f32 %v294, %v339
        %v341 = vpop.f32.mrf.mxu0
        %v342 = vpop.f32.mrf.mxu0
        %v343 = vpop.f32.mrf.mxu0
        %344 = vdwg.mxu0
        %345 = vadd.xlane.f32.xlu0 %v340
        %v346 = vpop.xlane.xlu0 %345
        %v347 = vrcp.pop 128.0
        %v348 = vmul.f32 %v346, %v347
        %v349 = vmul.f32 %v340, %v340
        %350 = vadd.xlane.f32.xlu0 %v349
        %v351 = vpop.xlane.xlu0 %350
        %v352 = vmul.f32 %v351, %v347
        %v353 = vmul.f32 %v348, %v348
        %v354 = vsub.f32 %v352, %v353
        %v355 = vsub.f32 %v340, %v348
        %v356 = vadd.f32 %v354, 1e-05
        %v357 = vrsqrt.pop %v356
        %v358 = vmul.f32 %v355, %v357
        %v359 = vlaneseq
        %v360 = vshrl.u32 %v359, 7
        %v361 = vsub.s32 0, %v360
        %v362 = vrot.slane %v281, %v361
        %v363 = vmul.f32 %v358, %v362
        %v364 = vlaneseq
        %v365 = vshrl.u32 %v364, 7
        %v366 = vsub.s32 0, %v365
        %v367 = vrot.slane %v282, %v366
        %v368 = vadd.f32 %v363, %v367
        %v369 = vmax.f32 %v368, 0.0
        %v370 = vpack.c.bf16 %v369, %v369
        %v371 = vld [vmem:[#allocation2] sm:$0xf]
        %v372 = vld [vmem:[#allocation2 + $0x4] sm:$0xf]
        %v373 = vld [vmem:[#allocation2 + $0x8] sm:$0xf]
        %v374 = vld [vmem:[#allocation2 + $0xc] sm:$0xf]
        %v375 = vld [vmem:[#allocation2 + $0x10] sm:$0xf]
        %v376 = vld [vmem:[#allocation2 + $0x14] sm:$0xf]
        %v377 = vld [vmem:[#allocation2 + $0x18] sm:$0xf]
        %v378 = vld [vmem:[#allocation2 + $0x1c] sm:$0xf]
        %v379 = vld [vmem:[#allocation2 + $0x20] sm:$0xf]
        %v380 = vld [vmem:[#allocation2 + $0x24] sm:$0xf]
        %v381 = vld [vmem:[#allocation2 + $0x28] sm:$0xf]
        %v382 = vld [vmem:[#allocation2 + $0x2c] sm:$0xf]
        %v383 = vld [vmem:[#allocation2 + $0x30] sm:$0xf]
        %v384 = vld [vmem:[#allocation2 + $0x34] sm:$0xf]
        %v385 = vld [vmem:[#allocation2 + $0x38] sm:$0xf]
        %v386 = vld [vmem:[#allocation2 + $0x3c] sm:$0xf]
        %v387 = vld [vmem:[%s274] sm:$0xf]
        %v388 = vld [vmem:[%s4] sm:$0x3]
        %vm389 = vcmask 31744
        %v391 = vsel %vm389, %v387, 0
        %vm393 = vcmask 1041408
        %v395 = vsel %vm393, %v388, 0
        %397 = vmatprep.subr.bf16.mxu0 0
        %398 = vmatpush1.bf16.msra.mxu0 0
        %399 = vmatprep.subr.bf16.mxu0 0
        %400 = vmatpush1.bf16.msra.mxu0 0
        %401 = vmatprep.subr.bf16.mxu0 0
        %402 = vmatpush1.bf16.msra.mxu0 0
        %403 = vmatprep.subr.bf16.mxu0 0
        %404 = vmatpush1.bf16.msra.mxu0 0
        %405 = vmatprep.subr.bf16.mxu0 0
        %406 = vmatpush1.bf16.msra.mxu0 0
        %407 = vmatprep.subr.bf16.mxu0 0
        %408 = vmatpush1.bf16.msra.mxu0 0
        %409 = vmatprep.subr.bf16.mxu0 0
        %410 = vmatpush1.bf16.msra.mxu0 0
        %411 = vmatprep.subr.bf16.mxu0 0
        %412 = vmatpush1.bf16.msra.mxu0 %v395
        %413 = vmatprep.subr.bf16.mxu0 0
        %414 = vmatpush2.bf16.msra.mxu0 0
        %415 = vmatprep.subr.bf16.mxu0 0
        %416 = vmatpush2.bf16.msra.mxu0 0
        %417 = vmatprep.subr.bf16.mxu0 0
        %418 = vmatpush2.bf16.msra.mxu0 0
        %419 = vmatprep.subr.bf16.mxu0 0
        %420 = vmatpush2.bf16.msra.mxu0 0
        %421 = vmatprep.subr.bf16.mxu0 0
        %422 = vmatpush2.bf16.msra.mxu0 0
        %423 = vmatprep.subr.bf16.mxu0 0
        %424 = vmatpush2.bf16.msra.mxu0 0
        %425 = vmatprep.subr.bf16.mxu0 0
        %426 = vmatpush2.bf16.msra.mxu0 0
        %427 = vmatprep.subr.bf16.mxu0 0
        %428 = vmatpush2.bf16.msra.mxu0 0
        %429 = vmatprep.mubr.bf16.mxu0 0
        %430 = vmatmul.mubr.bf16.gmra.mxu0 %v391
        %v431 = vpop.f32.mrf.mxu0
        %v432 = vadd.f32 0.0, %v431
        %v433 = vpop.f32.mrf.mxu0
        %v434 = vpop.f32.mrf.mxu0
        %v435 = vpop.f32.mrf.mxu0
        %436 = vdwg.mxu0
        %v453 = vunpack.c.l.b16 %v371
        %v454 = vunpack.c.l.b16 %v372
        %v455 = vunpack.c.l.b16 %v373
        %v456 = vunpack.c.l.b16 %v374
        %v457 = vunpack.c.l.b16 %v375
        %v458 = vunpack.c.l.b16 %v376
        %v459 = vunpack.c.l.b16 %v377
        %v460 = vunpack.c.l.b16 %v378
        %v461 = vunpack.c.l.b16 %v379
        %v462 = vunpack.c.l.b16 %v380
        %v463 = vunpack.c.l.b16 %v381
        %v464 = vunpack.c.l.b16 %v382
        %v465 = vunpack.c.l.b16 %v383
        %v466 = vunpack.c.l.b16 %v384
        %v467 = vunpack.c.l.b16 %v385
        %v468 = vunpack.c.l.b16 %v386
        %v469 = vpack.c.b16 %v454, %v453
        %v470 = vpack.c.b16 %v456, %v455
        %v471 = vpack.c.b16 %v458, %v457
        %v472 = vpack.c.b16 %v460, %v459
        %v473 = vpack.c.b16 %v462, %v461
        %v474 = vpack.c.b16 %v464, %v463
        %v475 = vpack.c.b16 %v466, %v465
        %v476 = vpack.c.b16 %v468, %v467
        %485 = vmatprep.subr.bf16.mxu0 0
        %486 = vmatpush1.bf16.msra.mxu0 %v476
        %487 = vmatprep.subr.bf16.mxu0 0
        %488 = vmatpush1.bf16.msra.mxu0 %v475
        %489 = vmatprep.subr.bf16.mxu0 0
        %490 = vmatpush1.bf16.msra.mxu0 %v474
        %491 = vmatprep.subr.bf16.mxu0 0
        %492 = vmatpush1.bf16.msra.mxu0 %v473
        %493 = vmatprep.subr.bf16.mxu0 0
        %494 = vmatpush1.bf16.msra.mxu0 %v472
        %495 = vmatprep.subr.bf16.mxu0 0
        %496 = vmatpush1.bf16.msra.mxu0 %v471
        %497 = vmatprep.subr.bf16.mxu0 0
        %498 = vmatpush1.bf16.msra.mxu0 %v470
        %499 = vmatprep.subr.bf16.mxu0 0
        %500 = vmatpush1.bf16.msra.mxu0 %v469
        %501 = vmatprep.subr.bf16.mxu0 0
        %502 = vmatpush2.bf16.msra.mxu0 0
        %503 = vmatprep.subr.bf16.mxu0 0
        %504 = vmatpush2.bf16.msra.mxu0 0
        %505 = vmatprep.subr.bf16.mxu0 0
        %506 = vmatpush2.bf16.msra.mxu0 0
        %507 = vmatprep.subr.bf16.mxu0 0
        %508 = vmatpush2.bf16.msra.mxu0 0
        %509 = vmatprep.subr.bf16.mxu0 0
        %510 = vmatpush2.bf16.msra.mxu0 0
        %511 = vmatprep.subr.bf16.mxu0 0
        %512 = vmatpush2.bf16.msra.mxu0 0
        %513 = vmatprep.subr.bf16.mxu0 0
        %514 = vmatpush2.bf16.msra.mxu0 0
        %515 = vmatprep.subr.bf16.mxu0 0
        %516 = vmatpush2.bf16.msra.mxu0 0
        %517 = vmatprep.mubr.bf16.mxu0 0
        %518 = vmatmul.mubr.bf16.gmra.mxu0 %v370
        %v519 = vpop.f32.mrf.mxu0
        %v520 = vadd.f32 %v432, %v519
        %v521 = vpop.f32.mrf.mxu0
        %v522 = vpop.f32.mrf.mxu0
        %v523 = vpop.f32.mrf.mxu0
        %524 = vdwg.mxu0
        %v525 = vlaneseq
        %v526 = vshrl.u32 %v525, 7
        %v527 = vsub.s32 0, %v526
        %v528 = vrot.slane %v283, %v527
        %v529 = vadd.f32 %v520, %v528
        %530 = vadd.xlane.f32.xlu0 %v529
        %v531 = vpop.xlane.xlu0 %530
        %v532 = vmul.f32 %v531, %v347
        %v533 = vmul.f32 %v529, %v529
        %534 = vadd.xlane.f32.xlu0 %v533
        %v535 = vpop.xlane.xlu0 %534
        %v536 = vmul.f32 %v535, %v347
        %v537 = vmul.f32 %v532, %v532
        %v538 = vsub.f32 %v536, %v537
        %v539 = vsub.f32 %v529, %v532
        %v540 = vadd.f32 %v538, 1e-05
        %v541 = vrsqrt.pop %v540
        %v542 = vmul.f32 %v539, %v541
        %v543 = vlaneseq
        %v544 = vshrl.u32 %v543, 7
        %v545 = vsub.s32 0, %v544
        %v546 = vrot.slane %v284, %v545
        %v547 = vmul.f32 %v542, %v546
        %v548 = vlaneseq
        %v549 = vshrl.u32 %v548, 7
        %v550 = vsub.s32 0, %v549
        %v551 = vrot.slane %v285, %v550
        %v552 = vadd.f32 %v547, %v551
        %v553 = vmax.f32 %v552, 0.0
        %v554 = vlaneseq
        %v555 = vshrl.u32 %v554, 7
        %v556 = vsub.s32 0, %v555
        %v557 = vrot.slane %v286, %v556
        %v558 = vmul.f32 %v553, %v557
        %559 = vadd.xlane.f32.xlu0 %v558
        %v560 = vpop.xlane.xlu0 %559
        %v561 = vlaneseq
        %v562 = vshrl.u32 %v561, 7
        %v563 = vsub.s32 0, %v562
        %v564 = vrot.slane %v287, %v563
        %v565 = vadd.f32 %v560, %v564
        %vm566 = vcmask 7168
        %567 = vst.msk [vmem:[%s278] sm:$0xff] %vm566, %v565
        %p568 = scmp.lt.s32.totalorder %s18, 2
        %s569 = scalar_select %p568, %s18, 2
        %s570 = smul.addr %s569, 8
        %s571 = scalar_lea.vmem %s6, %s570
        // Predicated region
        $region49: #{tpu_custom_call.1} parent=43 // pred_check
          %p572 = pneg %p172
        $region50: #{tpu_custom_call.1} parent=43 // pred_check_branch
          %574 = sbr.rel (%p572) target = $region52
        $region51: #{tpu_custom_call.1} parent=43 // pred_region
          _
        $region52: #{tpu_custom_call.1} parent=43 // pred_fallthru
          _
      $region44: #{tpu_custom_call.1} parent=5 // pred_fallthru
        _
      %p575 = scmp.le.s32.totalorder 2, %s13
      // Predicated region
      $region53: #{tpu_custom_call.1} parent=5 // pred_check
        %p576 = pneg %p575
      $region54: #{tpu_custom_call.1} parent=5 // pred_check_branch
        %578 = sbr.rel (%p576) target = $region56
      $region55: #{tpu_custom_call.1} parent=5 // pred_region
        %s579 = ssub.s32 %s13, 2
        // Predicated region
        $region57: #{tpu_custom_call.1} parent=55 // pred_check
          %p580 = pneg %p178
        $region58: #{tpu_custom_call.1} parent=55 // pred_check_branch
          %582 = sbr.rel (%p580) target = $region60
        $region59: #{tpu_custom_call.1} parent=55 // pred_region
          %p583 = scmp.lt.s32.totalorder %s19, 2
          %s584 = scalar_select %p583, %s19, 2
          %s585 = smul.addr %s584, 8
          %s586 = scalar_lea.vmem %s6, %s585
        $region60: #{tpu_custom_call.1} parent=55 // pred_fallthru
          _
      $region56: #{tpu_custom_call.1} parent=5 // pred_fallthru
        _
    $region6: #{tpu_custom_call.1} parent=1 // loop_footer
      %s17 = sadd.s32 1, %s13
    $region7: #{tpu_custom_call.1} parent=1 // loop_footer_branch
      %12 = sbr.rel target = $region3
    $region8: #{tpu_custom_call.1} parent=1 // loop_exit
      _
    %587 = vsyncpa [#allocation3], 1
    %s588 = scalar_lea.sflag [#allocation3], 1
    %589 = vsyncpa %s588, 1

</llo_original>
